<compile_context>
chip_gen: v5e
topology: v5e:2x2
jax: 0.10.0
libtpu: 0.0.40
codegen_flags: <defaults>
</compile_context>

<pallas_src>
import math
import jax
import jax.numpy as jnp
from jax.experimental import pallas as pl
from jax.experimental.pallas import tpu as pltpu


# ------------------------------ Pallas kernel --------------------------------

def _interact_kernel(s_anc_ref, q_anc_ref,                    # SMEM (prefetch)
                     s_ref, q_ref, wq_ref, bq_ref, ws_ref, bs_ref,   # VMEM in
                     s_out_ref, q_out_ref,                    # VMEM out
                     qa_proj_ref, q_gather_ref):              # VMEM scratch
    # s_ref      : (L, D)        current (b, i) support sequence
    # q_ref      : (NQ, L, D)    all query sequences of batch b (resident)
    # s_out_ref  : (NQ, L, D)    q_out_ref: (NQ, L, D)
    # qa_proj_ref: (NQ, D)       cached to_s(q anchor embeddings) for batch b
    b = pl.program_id(0)
    i = pl.program_id(1)
    NQ = q_ref.shape[0]

    # ---- per-batch cache: to_s(q anchor embeddings), shape (NQ, D) ----------
    @pl.when(i == 0)
    def _():
        for j in range(NQ):                         # NQ is small & static
            idx = q_anc_ref[b, j]
            q_gather_ref[pl.ds(j, 1), :] = q_ref[j, pl.ds(idx, 1), :]
        qa_proj_ref[...] = (
            jnp.dot(q_gather_ref[...], ws_ref[...],
                    preferred_element_type=jnp.float32) + bs_ref[...])

    # ---- this row's to_q(s anchor embedding), shape (1, D) ------------------
    sa_idx = s_anc_ref[b, i]
    sa = s_ref[pl.ds(sa_idx, 1), :]                                   # (1, D)
    sa_proj = (jnp.dot(sa, wq_ref[...],
                       preferred_element_type=jnp.float32) + bq_ref[...])

    s_blk = s_ref[...]                  # (L, D)
    q_blk = q_ref[...]                  # (NQ, L, D)
    qa = qa_proj_ref[...]               # (NQ, D)

    # s_out[j, l, d] = s[l, d] * qa[j, d]
    s_out_ref[...] = s_blk[None, :, :] * qa[:, None, :]
    # q_out[j, l, d] = q[j, l, d] * sa_proj[d]
    q_out_ref[...] = q_blk * sa_proj.reshape(1, 1, -1)


# -------------------------------- wrapper -------------------------------------

def interact_layer_forward(params, s, q, s_anchor, q_anchor,
                           s_mask, q_mask, B, N, K, Q):
    """Mirrors InteractLayer.forward. Returns (s_out, q_out), [B,NK,NQ,L,D] each."""
    del s_mask, q_mask                      # unused by the PyTorch forward
    BNK, L, D = s.shape
    NK, NQ = N * K, N * Q
    assert BNK == B * NK and q.shape == (B * NQ, L, D)

    s4 = s.reshape(B, NK, L, D)
    q4 = q.reshape(B, NQ, L, D)
    s_anc = s_anchor.reshape(B, NK).astype(jnp.int32)
    q_anc = q_anchor.reshape(B, NQ).astype(jnp.int32)

    wq = params["wq"]                       # to_q weight, stored as [Din, Dout]
    bq = params["bq"].reshape(1, D)
    ws = params["ws"]                       # to_s weight, stored as [Din, Dout]
    bs = params["bs"].reshape(1, D)

    grid_spec = pltpu.PrefetchScalarGridSpec(
        num_scalar_prefetch=2,
        grid=(B, NK),
        in_specs=[
            # s tile for (b, i); squeezed leading dims -> kernel sees (L, D)
            pl.BlockSpec((None, None, L, D), lambda b, i, *_: (b, i, 0, 0)),
            # all of batch b's queries; constant across i -> stays VMEM-resident
            pl.BlockSpec((None, NQ, L, D),   lambda b, i, *_: (b, 0, 0, 0)),
            pl.BlockSpec((D, D),             lambda b, i, *_: (0, 0)),   # Wq
            pl.BlockSpec((1, D),             lambda b, i, *_: (0, 0)),   # bq
            pl.BlockSpec((D, D),             lambda b, i, *_: (0, 0)),   # Ws
            pl.BlockSpec((1, D),             lambda b, i, *_: (0, 0)),   # bs
        ],
        out_specs=(
            pl.BlockSpec((None, None, NQ, L, D),
                         lambda b, i, *_: (b, i, 0, 0, 0)),
            pl.BlockSpec((None, None, NQ, L, D),
                         lambda b, i, *_: (b, i, 0, 0, 0)),
        ),
        scratch_shapes=[
            pltpu.VMEM((NQ, D), jnp.float32),   # cached to_s(q anchors)
            pltpu.VMEM((NQ, D), jnp.float32),   # gather staging buffer
        ],
    )

    s_out, q_out = pl.pallas_call(
        _interact_kernel,
        out_shape=(jax.ShapeDtypeStruct((B, NK, NQ, L, D), jnp.float32),
                   jax.ShapeDtypeStruct((B, NK, NQ, L, D), jnp.float32)),
        grid_spec=grid_spec,
        compiler_params=pltpu.CompilerParams(
            dimension_semantics=("parallel", "arbitrary")),
    )(s_anc, q_anc, s4, q4, wq, bq, ws, bs)
    return s_out, q_out


# --------------------------- parameter init -----------------------------------

def init_params(key, d_model):
    # Weights stored as [Din, Dout] (i.e. the transpose of torch.nn.Linear.weight).
    ks = jax.random.split(key, 4)
    lim = 1.0 / math.sqrt(d_model)
    wq = jax.random.uniform(ks[0], (d_model, d_model), jnp.float32, -lim, lim)
    bq = jax.random.uniform(ks[1], (d_model,), jnp.float32, -lim, lim)
    ws = jax.random.uniform(ks[2], (d_model, d_model), jnp.float32, -lim, lim)
    bs = jax.random.uniform(ks[3], (d_model,), jnp.float32, -lim, lim)
    return dict(wq=wq, bq=bq, ws=ws, bs=bs)


# --------------------------- pure-JAX reference --------------------------------

def ref_forward(params, s, q, s_anchor, q_anchor, B, N, K, Q):
    BNK, L, D = s.shape
    NK, NQ = N * K, N * Q
    sa = jnp.take_along_axis(s, s_anchor.reshape(-1, 1, 1), axis=1)[:, 0, :]
    qa = jnp.take_along_axis(q, q_anchor.reshape(-1, 1, 1), axis=1)[:, 0, :]
    sa = (sa @ params["wq"] + params["bq"]).reshape(B, NK, 1, 1, D)   # to_q
    qa = (qa @ params["ws"] + params["bs"]).reshape(B, 1, NQ, 1, D)   # to_s
    s5 = s.reshape(B, NK, 1, L, D)
    q5 = q.reshape(B, 1, NQ, L, D)
    s_out = s5 * qa
    q_out = q5 * sa
    return s_out, q_out


# ----------------------------------- main --------------------------------------

if __name__ == "__main__":
    B, N, K, Q, L, D = 2, 2, 2, 3, 8, 128
    NK, NQ = N * K, N * Q

    root = jax.random.PRNGKey(0)
    kp, k1, k2, k3, k4 = jax.random.split(root, 5)
    params = init_params(kp, D)

    s = jax.random.normal(k1, (B * NK, L, D), jnp.float32)
    q = jax.random.normal(k2, (B * NQ, L, D), jnp.float32)
    s_anchor = jax.random.randint(k3, (B * NK,), 0, L, dtype=jnp.int32)
    q_anchor = jax.random.randint(k4, (B * NQ,), 0, L, dtype=jnp.int32)

    s_out, q_out = interact_layer_forward(params, s, q, s_anchor, q_anchor,
                                          None, None, B, N, K, Q)
    jax.block_until_ready((s_out, q_out))

    rs, rq = ref_forward(params, s, q, s_anchor, q_anchor, B, N, K, Q)
    assert s_out.shape == (B, NK, NQ, L, D) and q_out.shape == (B, NK, NQ, L, D)
    assert jnp.allclose(s_out, rs, atol=1e-4, rtol=1e-4)
    assert jnp.allclose(q_out, rq, atol=1e-4, rtol=1e-4)
    print("KERNEL_OK")
</pallas_src>

<mosaic_0001>
module attributes {stable_mosaic.version = 11 : i64} {
  func.func @_interact_kernel(%arg0: i32, %arg1: i32, %arg2: memref<2x4xi32, #tpu.memory_space<smem>>, %arg3: memref<2x6xi32, #tpu.memory_space<smem>>, %arg4: memref<1x1x8x128xf32, #tpu.memory_space<vmem>>, %arg5: memref<1x6x8x128xf32, #tpu.memory_space<vmem>>, %arg6: memref<128x128xf32, #tpu.memory_space<vmem>>, %arg7: memref<1x128xf32, #tpu.memory_space<vmem>>, %arg8: memref<128x128xf32, #tpu.memory_space<vmem>>, %arg9: memref<1x128xf32, #tpu.memory_space<vmem>>, %arg10: memref<1x1x6x8x128xf32, #tpu.memory_space<vmem>>, %arg11: memref<1x1x6x8x128xf32, #tpu.memory_space<vmem>>, %arg12: memref<6x128xf32, #tpu.memory_space<vmem>>, %arg13: memref<6x128xf32, #tpu.memory_space<vmem>>) attributes {dimension_semantics = [#tpu.dimension_semantics<parallel>, #tpu.dimension_semantics<arbitrary>], iteration_bounds = array<i64: 2, 4>, scalar_prefetch = 2 : i64, scratch_operands = 2 : i64, tpu.core_type = #tpu.core_type<tc>, window_params = [{transform_indices = @transform_0, window_bounds = array<i64: 1, 1, 8, 128>}, {transform_indices = @transform_1, window_bounds = array<i64: 1, 6, 8, 128>}, {pipeline_mode = #tpu.pipeline_mode<synchronous>, transform_indices = @transform_2, window_bounds = array<i64: 128, 128>}, {pipeline_mode = #tpu.pipeline_mode<synchronous>, transform_indices = @transform_3, window_bounds = array<i64: 1, 128>}, {pipeline_mode = #tpu.pipeline_mode<synchronous>, transform_indices = @transform_4, window_bounds = array<i64: 128, 128>}, {pipeline_mode = #tpu.pipeline_mode<synchronous>, transform_indices = @transform_5, window_bounds = array<i64: 1, 128>}, {transform_indices = @transform_6, window_bounds = array<i64: 1, 1, 6, 8, 128>}, {transform_indices = @transform_7, window_bounds = array<i64: 1, 1, 6, 8, 128>}]} {
    %c0_i32 = arith.constant 0 : i32
    %0 = arith.cmpi eq, %arg1, %c0_i32 : i32
    %1 = arith.extui %0 : i1 to i32
    %c0_i32_0 = arith.constant 0 : i32
    %2 = arith.cmpi ne, %1, %c0_i32_0 : i32
    scf.if %2 {
      %32 = arith.index_cast %arg0 : i32 to index
      %c0_27 = arith.constant 0 : index
      %33 = memref.load %arg3[%32, %c0_27] : memref<2x6xi32, #tpu.memory_space<smem>>
      %c0_28 = arith.constant 0 : index
      %c0_29 = arith.constant 0 : index
      %34 = arith.index_cast %33 : i32 to index
      %c0_30 = arith.constant 0 : index
      %35 = vector.load %arg5[%c0_28, %c0_29, %34, %c0_30] : memref<1x6x8x128xf32, #tpu.memory_space<vmem>>, vector<1x1x1x128xf32>
      %36 = vector.shape_cast %35 : vector<1x1x1x128xf32> to vector<1x128xf32>
      %c0_31 = arith.constant 0 : index
      %c0_32 = arith.constant 0 : index
      %37 = vector.load %arg13[%c0_31, %c0_32] : memref<6x128xf32, #tpu.memory_space<vmem>>, vector<1x128xf32>
      tpu.vector_store %arg13[%c0_31, %c0_32], %36 {strides = array<i32>} : memref<6x128xf32, #tpu.memory_space<vmem>>, vector<1x128xf32>,
      %38 = arith.index_cast %arg0 : i32 to index
      %c1 = arith.constant 1 : index
      %39 = memref.load %arg3[%38, %c1] : memref<2x6xi32, #tpu.memory_space<smem>>
      %c0_33 = arith.constant 0 : index
      %c1_34 = arith.constant 1 : index
      %40 = arith.index_cast %39 : i32 to index
      %c0_35 = arith.constant 0 : index
      %41 = vector.load %arg5[%c0_33, %c1_34, %40, %c0_35] : memref<1x6x8x128xf32, #tpu.memory_space<vmem>>, vector<1x1x1x128xf32>
      %42 = vector.shape_cast %41 : vector<1x1x1x128xf32> to vector<1x128xf32>
      %c1_36 = arith.constant 1 : index
      %c0_37 = arith.constant 0 : index
      %43 = vector.load %arg13[%c1_36, %c0_37] : memref<6x128xf32, #tpu.memory_space<vmem>>, vector<1x128xf32>
      tpu.vector_store %arg13[%c1_36, %c0_37], %42 {strides = array<i32>} : memref<6x128xf32, #tpu.memory_space<vmem>>, vector<1x128xf32>,
      %44 = arith.index_cast %arg0 : i32 to index
      %c2 = arith.constant 2 : index
      %45 = memref.load %arg3[%44, %c2] : memref<2x6xi32, #tpu.memory_space<smem>>
      %c0_38 = arith.constant 0 : index
      %c2_39 = arith.constant 2 : index
      %46 = arith.index_cast %45 : i32 to index
      %c0_40 = arith.constant 0 : index
      %47 = vector.load %arg5[%c0_38, %c2_39, %46, %c0_40] : memref<1x6x8x128xf32, #tpu.memory_space<vmem>>, vector<1x1x1x128xf32>
      %48 = vector.shape_cast %47 : vector<1x1x1x128xf32> to vector<1x128xf32>
      %c2_41 = arith.constant 2 : index
      %c0_42 = arith.constant 0 : index
      %49 = vector.load %arg13[%c2_41, %c0_42] : memref<6x128xf32, #tpu.memory_space<vmem>>, vector<1x128xf32>
      tpu.vector_store %arg13[%c2_41, %c0_42], %48 {strides = array<i32>} : memref<6x128xf32, #tpu.memory_space<vmem>>, vector<1x128xf32>,
      %50 = arith.index_cast %arg0 : i32 to index
      %c3 = arith.constant 3 : index
      %51 = memref.load %arg3[%50, %c3] : memref<2x6xi32, #tpu.memory_space<smem>>
      %c0_43 = arith.constant 0 : index
      %c3_44 = arith.constant 3 : index
      %52 = arith.index_cast %51 : i32 to index
      %c0_45 = arith.constant 0 : index
      %53 = vector.load %arg5[%c0_43, %c3_44, %52, %c0_45] : memref<1x6x8x128xf32, #tpu.memory_space<vmem>>, vector<1x1x1x128xf32>
      %54 = vector.shape_cast %53 : vector<1x1x1x128xf32> to vector<1x128xf32>
      %c3_46 = arith.constant 3 : index
      %c0_47 = arith.constant 0 : index
      %55 = vector.load %arg13[%c3_46, %c0_47] : memref<6x128xf32, #tpu.memory_space<vmem>>, vector<1x128xf32>
      tpu.vector_store %arg13[%c3_46, %c0_47], %54 {strides = array<i32>} : memref<6x128xf32, #tpu.memory_space<vmem>>, vector<1x128xf32>,
      %56 = arith.index_cast %arg0 : i32 to index
      %c4 = arith.constant 4 : index
      %57 = memref.load %arg3[%56, %c4] : memref<2x6xi32, #tpu.memory_space<smem>>
      %c0_48 = arith.constant 0 : index
      %c4_49 = arith.constant 4 : index
      %58 = arith.index_cast %57 : i32 to index
      %c0_50 = arith.constant 0 : index
      %59 = vector.load %arg5[%c0_48, %c4_49, %58, %c0_50] : memref<1x6x8x128xf32, #tpu.memory_space<vmem>>, vector<1x1x1x128xf32>
      %60 = vector.shape_cast %59 : vector<1x1x1x128xf32> to vector<1x128xf32>
      %c4_51 = arith.constant 4 : index
      %c0_52 = arith.constant 0 : index
      %61 = vector.load %arg13[%c4_51, %c0_52] : memref<6x128xf32, #tpu.memory_space<vmem>>, vector<1x128xf32>
      tpu.vector_store %arg13[%c4_51, %c0_52], %60 {strides = array<i32>} : memref<6x128xf32, #tpu.memory_space<vmem>>, vector<1x128xf32>,
      %62 = arith.index_cast %arg0 : i32 to index
      %c5 = arith.constant 5 : index
      %63 = memref.load %arg3[%62, %c5] : memref<2x6xi32, #tpu.memory_space<smem>>
      %c0_53 = arith.constant 0 : index
      %c5_54 = arith.constant 5 : index
      %64 = arith.index_cast %63 : i32 to index
      %c0_55 = arith.constant 0 : index
      %65 = vector.load %arg5[%c0_53, %c5_54, %64, %c0_55] : memref<1x6x8x128xf32, #tpu.memory_space<vmem>>, vector<1x1x1x128xf32>
      %66 = vector.shape_cast %65 : vector<1x1x1x128xf32> to vector<1x128xf32>
      %c5_56 = arith.constant 5 : index
      %c0_57 = arith.constant 0 : index
      %67 = vector.load %arg13[%c5_56, %c0_57] : memref<6x128xf32, #tpu.memory_space<vmem>>, vector<1x128xf32>
      tpu.vector_store %arg13[%c5_56, %c0_57], %66 {strides = array<i32>} : memref<6x128xf32, #tpu.memory_space<vmem>>, vector<1x128xf32>,
      %c0_58 = arith.constant 0 : index
      %c0_59 = arith.constant 0 : index
      %68 = vector.load %arg13[%c0_58, %c0_59] : memref<6x128xf32, #tpu.memory_space<vmem>>, vector<6x128xf32>
      %c0_60 = arith.constant 0 : index
      %c0_61 = arith.constant 0 : index
      %69 = vector.load %arg8[%c0_60, %c0_61] : memref<128x128xf32, #tpu.memory_space<vmem>>, vector<128x128xf32>
      %cst_62 = arith.constant dense<0.000000e+00> : vector<6x128xf32>
      %70 = tpu.matmul %68, %69, %cst_62 {dimension_numbers = #tpu.dot_dimension_numbers<[1], [0], [0], [1], [0, 0, 1, 1], [], []>} : vector<6x128xf32>, vector<128x128xf32>, vector<6x128xf32> -> vector<6x128xf32>
      %c0_63 = arith.constant 0 : index
      %c0_64 = arith.constant 0 : index
      %71 = vector.load %arg9[%c0_63, %c0_64] : memref<1x128xf32, #tpu.memory_space<vmem>>, vector<1x128xf32>
      %72 = vector.broadcast %71 : vector<1x128xf32> to vector<6x128xf32>
      %73 = arith.addf %70, %72 : vector<6x128xf32>
      %c0_65 = arith.constant 0 : index
      %c0_66 = arith.constant 0 : index
      %74 = vector.load %arg12[%c0_65, %c0_66] : memref<6x128xf32, #tpu.memory_space<vmem>>, vector<6x128xf32>
      tpu.vector_store %arg12[%c0_65, %c0_66], %73 {strides = array<i32>} : memref<6x128xf32, #tpu.memory_space<vmem>>, vector<6x128xf32>,
    } else {
    }
    %3 = arith.index_cast %arg0 : i32 to index
    %4 = arith.index_cast %arg1 : i32 to index
    %5 = memref.load %arg2[%3, %4] : memref<2x4xi32, #tpu.memory_space<smem>>
    %c0 = arith.constant 0 : index
    %c0_1 = arith.constant 0 : index
    %6 = arith.index_cast %5 : i32 to index
    %c0_2 = arith.constant 0 : index
    %7 = vector.load %arg4[%c0, %c0_1, %6, %c0_2] : memref<1x1x8x128xf32, #tpu.memory_space<vmem>>, vector<1x1x1x128xf32>
    %8 = vector.shape_cast %7 : vector<1x1x1x128xf32> to vector<1x128xf32>
    %c0_3 = arith.constant 0 : index
    %c0_4 = arith.constant 0 : index
    %9 = vector.load %arg6[%c0_3, %c0_4] : memref<128x128xf32, #tpu.memory_space<vmem>>, vector<128x128xf32>
    %cst = arith.constant dense<0.000000e+00> : vector<1x128xf32>
    %10 = tpu.matmul %8, %9, %cst {dimension_numbers = #tpu.dot_dimension_numbers<[1], [0], [0], [1], [0, 0, 1, 1], [], []>} : vector<1x128xf32>, vector<128x128xf32>, vector<1x128xf32> -> vector<1x128xf32>
    %c0_5 = arith.constant 0 : index
    %c0_6 = arith.constant 0 : index
    %11 = vector.load %arg7[%c0_5, %c0_6] : memref<1x128xf32, #tpu.memory_space<vmem>>, vector<1x128xf32>
    %12 = arith.addf %10, %11 : vector<1x128xf32>
    %c0_7 = arith.constant 0 : index
    %c0_8 = arith.constant 0 : index
    %c0_9 = arith.constant 0 : index
    %c0_10 = arith.constant 0 : index
    %13 = vector.load %arg4[%c0_7, %c0_8, %c0_9, %c0_10] : memref<1x1x8x128xf32, #tpu.memory_space<vmem>>, vector<1x1x8x128xf32>
    %14 = vector.shape_cast %13 : vector<1x1x8x128xf32> to vector<8x128xf32>
    %c0_11 = arith.constant 0 : index
    %c0_12 = arith.constant 0 : index
    %c0_13 = arith.constant 0 : index
    %c0_14 = arith.constant 0 : index
    %15 = vector.load %arg5[%c0_11, %c0_12, %c0_13, %c0_14] : memref<1x6x8x128xf32, #tpu.memory_space<vmem>>, vector<1x6x8x128xf32>
    %16 = vector.shape_cast %15 : vector<1x6x8x128xf32> to vector<6x8x128xf32>
    %c0_15 = arith.constant 0 : index
    %c0_16 = arith.constant 0 : index
    %17 = vector.load %arg12[%c0_15, %c0_16] : memref<6x128xf32, #tpu.memory_space<vmem>>, vector<6x128xf32>
    %18 = vector.shape_cast %14 : vector<8x128xf32> to vector<1x8x128xf32>
    %19 = vector.shape_cast %17 : vector<6x128xf32> to vector<6x1x128xf32>
    %20 = vector.broadcast %18 : vector<1x8x128xf32> to vector<6x8x128xf32>
    %21 = vector.broadcast %19 : vector<6x1x128xf32> to vector<6x8x128xf32>
    %22 = arith.mulf %20, %21 : vector<6x8x128xf32>
    %c0_17 = arith.constant 0 : index
    %c0_18 = arith.constant 0 : index
    %c0_19 = arith.constant 0 : index
    %c0_20 = arith.constant 0 : index
    %c0_21 = arith.constant 0 : index
    %23 = vector.load %arg10[%c0_17, %c0_18, %c0_19, %c0_20, %c0_21] : memref<1x1x6x8x128xf32, #tpu.memory_space<vmem>>, vector<1x1x6x8x128xf32>
    %24 = vector.shape_cast %23 : vector<1x1x6x8x128xf32> to vector<6x8x128xf32>
    %25 = vector.shape_cast %22 : vector<6x8x128xf32> to vector<1x1x6x8x128xf32>
    tpu.vector_store %arg10[%c0_17, %c0_18, %c0_19, %c0_20, %c0_21], %25 {strides = array<i32>} : memref<1x1x6x8x128xf32, #tpu.memory_space<vmem>>, vector<1x1x6x8x128xf32>,
    %26 = vector.shape_cast %12 : vector<1x128xf32> to vector<1x1x128xf32>
    %27 = vector.broadcast %26 : vector<1x1x128xf32> to vector<6x8x128xf32>
    %28 = arith.mulf %16, %27 : vector<6x8x128xf32>
    %c0_22 = arith.constant 0 : index
    %c0_23 = arith.constant 0 : index
    %c0_24 = arith.constant 0 : index
    %c0_25 = arith.constant 0 : index
    %c0_26 = arith.constant 0 : index
    %29 = vector.load %arg11[%c0_22, %c0_23, %c0_24, %c0_25, %c0_26] : memref<1x1x6x8x128xf32, #tpu.memory_space<vmem>>, vector<1x1x6x8x128xf32>
    %30 = vector.shape_cast %29 : vector<1x1x6x8x128xf32> to vector<6x8x128xf32>
    %31 = vector.shape_cast %28 : vector<6x8x128xf32> to vector<1x1x6x8x128xf32>
    tpu.vector_store %arg11[%c0_22, %c0_23, %c0_24, %c0_25, %c0_26], %31 {strides = array<i32>} : memref<1x1x6x8x128xf32, #tpu.memory_space<vmem>>, vector<1x1x6x8x128xf32>,
    return
  }
  func.func @transform_0(%arg0: i32, %arg1: i32, %arg2: memref<2x4xi32, #tpu.memory_space<smem>>, %arg3: memref<2x6xi32, #tpu.memory_space<smem>>) -> (i32, i32, i32, i32) {
    %c0_i32 = arith.constant 0 : i32
    %c0_i32_0 = arith.constant 0 : i32
    %c0_i32_1 = arith.constant 0 : i32
    return %arg0, %arg1, %c0_i32, %c0_i32_0 : i32, i32, i32, i32
  }
  func.func @transform_1(%arg0: i32, %arg1: i32, %arg2: memref<2x4xi32, #tpu.memory_space<smem>>, %arg3: memref<2x6xi32, #tpu.memory_space<smem>>) -> (i32, i32, i32, i32) {
    %c0_i32 = arith.constant 0 : i32
    %c0_i32_0 = arith.constant 0 : i32
    %c0_i32_1 = arith.constant 0 : i32
    %c0_i32_2 = arith.constant 0 : i32
    return %arg0, %c0_i32, %c0_i32_0, %c0_i32_1 : i32, i32, i32, i32
  }
  func.func @transform_2(%arg0: i32, %arg1: i32, %arg2: memref<2x4xi32, #tpu.memory_space<smem>>, %arg3: memref<2x6xi32, #tpu.memory_space<smem>>) -> (i32, i32) {
    %c0_i32 = arith.constant 0 : i32
    %c0_i32_0 = arith.constant 0 : i32
    %c0_i32_1 = arith.constant 0 : i32
    return %c0_i32, %c0_i32_0 : i32, i32
  }
  func.func @transform_3(%arg0: i32, %arg1: i32, %arg2: memref<2x4xi32, #tpu.memory_space<smem>>, %arg3: memref<2x6xi32, #tpu.memory_space<smem>>) -> (i32, i32) {
    %c0_i32 = arith.constant 0 : i32
    %c0_i32_0 = arith.constant 0 : i32
    %c0_i32_1 = arith.constant 0 : i32
    return %c0_i32, %c0_i32_0 : i32, i32
  }
  func.func @transform_4(%arg0: i32, %arg1: i32, %arg2: memref<2x4xi32, #tpu.memory_space<smem>>, %arg3: memref<2x6xi32, #tpu.memory_space<smem>>) -> (i32, i32) {
    %c0_i32 = arith.constant 0 : i32
    %c0_i32_0 = arith.constant 0 : i32
    %c0_i32_1 = arith.constant 0 : i32
    return %c0_i32, %c0_i32_0 : i32, i32
  }
  func.func @transform_5(%arg0: i32, %arg1: i32, %arg2: memref<2x4xi32, #tpu.memory_space<smem>>, %arg3: memref<2x6xi32, #tpu.memory_space<smem>>) -> (i32, i32) {
    %c0_i32 = arith.constant 0 : i32
    %c0_i32_0 = arith.constant 0 : i32
    %c0_i32_1 = arith.constant 0 : i32
    return %c0_i32, %c0_i32_0 : i32, i32
  }
  func.func @transform_6(%arg0: i32, %arg1: i32, %arg2: memref<2x4xi32, #tpu.memory_space<smem>>, %arg3: memref<2x6xi32, #tpu.memory_space<smem>>) -> (i32, i32, i32, i32, i32) {
    %c0_i32 = arith.constant 0 : i32
    %c0_i32_0 = arith.constant 0 : i32
    %c0_i32_1 = arith.constant 0 : i32
    %c0_i32_2 = arith.constant 0 : i32
    return %arg0, %arg1, %c0_i32, %c0_i32_0, %c0_i32_1 : i32, i32, i32, i32, i32
  }
  func.func @transform_7(%arg0: i32, %arg1: i32, %arg2: memref<2x4xi32, #tpu.memory_space<smem>>, %arg3: memref<2x6xi32, #tpu.memory_space<smem>>) -> (i32, i32, i32, i32, i32) {
    %c0_i32 = arith.constant 0 : i32
    %c0_i32_0 = arith.constant 0 : i32
    %c0_i32_1 = arith.constant 0 : i32
    %c0_i32_2 = arith.constant 0 : i32
    return %arg0, %arg1, %c0_i32, %c0_i32_0, %c0_i32_1 : i32, i32, i32, i32, i32
  }
}

</mosaic_0001>

<llo_original>
// kernel: tpu_custom_call.1
$region0: #{tpu_custom_call.1}
  #allocation0 [shape = 'u32[]', space=smem, size = 0x4, offset = 0x4, fixed_abs, tag = 'smem constant byte address 0x4 - core index']
  #allocation1 [shape = 'u32[72,128]{1,0:T(1,128)}', space=vmem, size = 0x9000, scoped, tag = 'internal scratch']
  #allocation2 [shape = 'f32[6,128]{1,0:T(8,128)}', space=vmem, size = 0x1000, scoped, tag = 'scratch operand']
  #allocation3 [shape = 'f32[6,128]{1,0:T(8,128)}', space=vmem, size = 0x1000, scoped, tag = 'scratch operand']
  #allocation4 [shape = 's32[1]{0}', space=sflag, size = 0x4, scoped, tag = 'scoped memory for tpu_custom_call.1']
  #allocation5 [shape = 'u8[1024]{0}', space=smem, size = 0x400, scoped, tag = 'prefetched SMEM operand 0']
  #allocation6 [shape = 'u8[1024]{0}', space=smem, size = 0x400, scoped, tag = 'prefetched SMEM operand 1']
  %s0 = inlined_call_operand.hbm [shape: s32[2,4], index: 0, kind: input, shape index: {}]
  %s1 = inlined_call_operand.hbm [shape: s32[2,6], index: 1, kind: input, shape index: {}]
  %s2 = inlined_call_operand.hbm [shape: f32[2,4,8,128], index: 2, kind: input, shape index: {}]
  %s3 = inlined_call_operand.hbm [shape: f32[2,6,8,128], index: 3, kind: input, shape index: {}]
  %s4 = inlined_call_operand.hbm [shape: f32[128,128], index: 4, kind: input, shape index: {}]
  %s5 = inlined_call_operand.vmem [shape: f32[1,128], index: 5, kind: input, shape index: {}]
  %s6 = inlined_call_operand.hbm [shape: f32[128,128], index: 6, kind: input, shape index: {}]
  %s7 = inlined_call_operand.vmem [shape: f32[1,128], index: 7, kind: input, shape index: {}]
  %s8 = inlined_call_operand.hbm [shape: f32[2,4,6,8,128], index: 8, kind: output, shape index: {0}]
  %s9 = inlined_call_operand.hbm [shape: f32[2,4,6,8,128], index: 9, kind: output, shape index: {1}]
  %10 = xla_tuple %s8, %s9
  %s11 = sld [smem:[#allocation0]]
  $region85: #{tpu_custom_call.1} parent=0
    _
  %s13 = ssub.s32 1, %s11
  %s14 = scalar_select 0, %s13, %s11
  %s16 = sshll.u32 %s0, 4
  %s17 = int_to_ptr.hbm [resolvable:$true] %s16
  %19 = dma.hbm_to_smem %s17, 32, [#allocation5], [#allocation4]
  %s21 = sshll.u32 %s1, 4
  %s22 = int_to_ptr.hbm [resolvable:$true] %s21
  %24 = dma.hbm_to_smem %s22, 32, [#allocation6], [#allocation4]
  %26 = dma.done [#allocation4], 64
  %27 = sfence
  $region1: #{tpu_custom_call.1} parent=0
    #allocation7 [shape = 'u8[8192]{0}', space=vmem, size = 0x2000, scoped, tag = 'input window, operand 2']
    #allocation8 [shape = 's32[2]{0}', space=sflag, size = 0x8, scoped, tag = 'scoped memory for tpu_custom_call.1']
    #allocation9 [shape = 's32[2]{0}', space=sflag, size = 0x8, scoped, tag = 'scoped memory for tpu_custom_call.1']
    #allocation10 [shape = 'u8[49152]{0}', space=vmem, size = 0xc000, scoped, tag = 'input window, operand 3']
    #allocation11 [shape = 's32[2]{0}', space=sflag, size = 0x8, scoped, tag = 'scoped memory for tpu_custom_call.1']
    #allocation12 [shape = 'u8[65536]{0}', space=vmem, size = 0x10000, scoped, tag = 'input window, operand 4, single buffered']
    #allocation13 [shape = 'u8[65536]{0}', space=vmem, size = 0x10000, scoped, tag = 'input window, operand 6, single buffered']
    #allocation14 [shape = 's32[1]{0}', space=sflag, size = 0x4, scoped, tag = 'scoped memory for tpu_custom_call.1']
    #allocation15 [shape = 'u8[49152]{0}', space=vmem, size = 0xc000, scoped, tag = 'output window, operand 0']
    #allocation16 [shape = 'u8[49152]{0}', space=vmem, size = 0xc000, scoped, tag = 'output window, operand 1']
    #allocation17 [shape = 's32[2]{0}', space=sflag, size = 0x8, scoped, tag = 'scoped memory for tpu_custom_call.1']
    %28 = vsyncpa [#allocation8], 0
    %s29 = scalar_lea.sflag [#allocation8], 1
    %30 = vsyncpa %s29, 0
    %31 = vsyncpa [#allocation11], 0
    %s32 = scalar_lea.sflag [#allocation11], 1
    %33 = vsyncpa %s32, 0
    %34 = vsyncpa [#allocation14], 0
    %35 = vsyncpa [#allocation9], 0
    %s36 = scalar_lea.sflag [#allocation9], 1
    %37 = vsyncpa %s36, 0
    %38 = vsyncpa [#allocation17], 0
    %s39 = scalar_lea.sflag [#allocation17], 1
    %40 = vsyncpa %s39, 0
    loop: start=0, step=1, limit=10
    $region2: #{tpu_custom_call.1} parent=1 // loop_pre_header
      _
    $region3: #{tpu_custom_call.1} parent=1 // loop_header
      %s42 = sphi 0, %s46
      %p43 = scmp.ge.s32.totalorder %s42, 10
      %s49 = sphi 0, %s61
      %s50 = sphi 0, %s57
      %s51 = sphi 0, %s49
      %s52 = sphi 0, %s50
      %s53 = sphi 0, %s51
      %s54 = sphi 0, %s52
      %s66 = sphi 0, %s68
      %s69 = sphi 0, %s66
      %s70 = sphi 0, %s69
      %s86 = sphi 0, %s70
      %s92 = sphi 0, %s94
      %s95 = sphi 0, %s92
      %s96 = sphi 0, %s95
      %s112 = sphi 0, %s96
      %s116 = sphi 0, %s116
      %s118 = sphi 0, %s116
      %s119 = sphi 0, %s118
      %s133 = sphi 0, %s119
      %s137 = sphi 0, %s137
      %s139 = sphi 0, %s137
      %s140 = sphi 0, %s139
      %s154 = sphi 0, %s140
      %s158 = sphi 0, %s158
      %s160 = sphi 0, %s158
      %s161 = sphi 0, %s160
      %s175 = sphi 0, %s161
      %s179 = sphi 0, %s179
      %s181 = sphi 0, %s179
      %s182 = sphi 0, %s181
      %s196 = sphi 0, %s182
      %s204 = sphi 0, %s206
      %s207 = sphi 0, %s204
      %s208 = sphi 0, %s207
      %s224 = sphi 0, %s208
      %s232 = sphi 0, %s234
      %s235 = sphi 0, %s232
      %s236 = sphi 0, %s235
      %s252 = sphi 0, %s236
    $region4: #{tpu_custom_call.1} parent=1 // loop_header_branch
      %45 = sbr.rel (%p43) target = $region8
    $region5: #{tpu_custom_call.1} parent=1 // loop_body
      %s47 = ssub.s32 %s42, 1
      %s48 = ssub.s32 %s42, 2
      %s55 = sadd.s32 1, %s50
      %p56 = scmp.ge.s32.totalorder %s55, 4
      %s57 = scalar_select %p56, 0, %s55
      %s58 = sadd.s32 1, %s49
      %s59 = scalar_select %p56, %s58, %s49
      %p60 = scmp.ge.s32.totalorder %s59, 2
      %s61 = scalar_select %p60, 0, %s59
      %s62 = ssub.s32 %s49, %s61
      %s63 = ssub.s32 %s50, %s57
      %s64 = sor.u32 %s62, %s63
      %p65 = scmp.eq.s32.totalorder %s64, 0
      %s67 = sadd.s32 %s66, 1
      %s68 = scalar_select %p65, %s66, %s67
      %p71 = pneg %p65
      %p72 = scmp.eq.s32.totalorder %s42, 7
      %p73 = por %p71, %p72
      %p74 = scmp.ne.s32.totalorder %s66, %s69
      %p75 = scmp.eq.s32.totalorder %s42, 0
      %p76 = por %p74, %p75
      %p77 = scmp.ne.s32.totalorder %s66, %s69
      %p78 = scmp.eq.s32.totalorder %s47, 7
      %p79 = por %p77, %p78
      %p80 = scmp.ne.s32.totalorder %s69, %s70
      %p81 = scmp.eq.s32.totalorder %s47, 0
      %p82 = por %p80, %p81
      %p83 = scmp.ne.s32.totalorder %s69, %s70
      %p84 = scmp.eq.s32.totalorder %s48, 7
      %p85 = por %p83, %p84
      %p87 = scmp.ne.s32.totalorder %s70, %s86
      %p88 = scmp.eq.s32.totalorder %s48, 0
      %p89 = por %p87, %p88
      %s90 = ssub.s32 %s49, %s61
      %p91 = scmp.eq.s32.totalorder %s90, 0
      %s93 = sadd.s32 %s92, 1
      %s94 = scalar_select %p91, %s92, %s93
      %p97 = pneg %p91
      %p98 = scmp.eq.s32.totalorder %s42, 7
      %p99 = por %p97, %p98
      %p100 = scmp.ne.s32.totalorder %s92, %s95
      %p101 = scmp.eq.s32.totalorder %s42, 0
      %p102 = por %p100, %p101
      %p103 = scmp.ne.s32.totalorder %s92, %s95
      %p104 = scmp.eq.s32.totalorder %s47, 7
      %p105 = por %p103, %p104
      %p106 = scmp.ne.s32.totalorder %s95, %s96
      %p107 = scmp.eq.s32.totalorder %s47, 0
      %p108 = por %p106, %p107
      %p109 = scmp.ne.s32.totalorder %s95, %s96
      %p110 = scmp.eq.s32.totalorder %s48, 7
      %p111 = por %p109, %p110
      %p113 = scmp.ne.s32.totalorder %s96, %s112
      %p114 = scmp.eq.s32.totalorder %s48, 0
      %p115 = por %p113, %p114
      %s117 = sadd.s32 %s116, 1
      %p120 = scmp.eq.s32.totalorder %s42, 7
      %p121 = scmp.ne.s32.totalorder %s116, %s118
      %p122 = scmp.eq.s32.totalorder %s42, 0
      %p123 = por %p121, %p122
      %p124 = scmp.ne.s32.totalorder %s116, %s118
      %p125 = scmp.eq.s32.totalorder %s47, 7
      %p126 = por %p124, %p125
      %p127 = scmp.ne.s32.totalorder %s118, %s119
      %p128 = scmp.eq.s32.totalorder %s47, 0
      %p129 = por %p127, %p128
      %p130 = scmp.ne.s32.totalorder %s118, %s119
      %p131 = scmp.eq.s32.totalorder %s48, 7
      %p132 = por %p130, %p131
      %p134 = scmp.ne.s32.totalorder %s119, %s133
      %p135 = scmp.eq.s32.totalorder %s48, 0
      %p136 = por %p134, %p135
      %s138 = sadd.s32 %s137, 1
      %p141 = scmp.eq.s32.totalorder %s42, 7
      %p142 = scmp.ne.s32.totalorder %s137, %s139
      %p143 = scmp.eq.s32.totalorder %s42, 0
      %p144 = por %p142, %p143
      %p145 = scmp.ne.s32.totalorder %s137, %s139
      %p146 = scmp.eq.s32.totalorder %s47, 7
      %p147 = por %p145, %p146
      %p148 = scmp.ne.s32.totalorder %s139, %s140
      %p149 = scmp.eq.s32.totalorder %s47, 0
      %p150 = por %p148, %p149
      %p151 = scmp.ne.s32.totalorder %s139, %s140
      %p152 = scmp.eq.s32.totalorder %s48, 7
      %p153 = por %p151, %p152
      %p155 = scmp.ne.s32.totalorder %s140, %s154
      %p156 = scmp.eq.s32.totalorder %s48, 0
      %p157 = por %p155, %p156
      %s159 = sadd.s32 %s158, 1
      %p162 = scmp.eq.s32.totalorder %s42, 7
      %p163 = scmp.ne.s32.totalorder %s158, %s160
      %p164 = scmp.eq.s32.totalorder %s42, 0
      %p165 = por %p163, %p164
      %p166 = scmp.ne.s32.totalorder %s158, %s160
      %p167 = scmp.eq.s32.totalorder %s47, 7
      %p168 = por %p166, %p167
      %p169 = scmp.ne.s32.totalorder %s160, %s161
      %p170 = scmp.eq.s32.totalorder %s47, 0
      %p171 = por %p169, %p170
      %p172 = scmp.ne.s32.totalorder %s160, %s161
      %p173 = scmp.eq.s32.totalorder %s48, 7
      %p174 = por %p172, %p173
      %p176 = scmp.ne.s32.totalorder %s161, %s175
      %p177 = scmp.eq.s32.totalorder %s48, 0
      %p178 = por %p176, %p177
      %s180 = sadd.s32 %s179, 1
      %p183 = scmp.eq.s32.totalorder %s42, 7
      %p184 = scmp.ne.s32.totalorder %s179, %s181
      %p185 = scmp.eq.s32.totalorder %s42, 0
      %p186 = por %p184, %p185
      %p187 = scmp.ne.s32.totalorder %s179, %s181
      %p188 = scmp.eq.s32.totalorder %s47, 7
      %p189 = por %p187, %p188
      %p190 = scmp.ne.s32.totalorder %s181, %s182
      %p191 = scmp.eq.s32.totalorder %s47, 0
      %p192 = por %p190, %p191
      %p193 = scmp.ne.s32.totalorder %s181, %s182
      %p194 = scmp.eq.s32.totalorder %s48, 7
      %p195 = por %p193, %p194
      %p197 = scmp.ne.s32.totalorder %s182, %s196
      %p198 = scmp.eq.s32.totalorder %s48, 0
      %p199 = por %p197, %p198
      %s200 = ssub.s32 %s49, %s61
      %s201 = ssub.s32 %s50, %s57
      %s202 = sor.u32 %s200, %s201
      %p203 = scmp.eq.s32.totalorder %s202, 0
      %s205 = sadd.s32 %s204, 1
      %s206 = scalar_select %p203, %s204, %s205
      %p209 = pneg %p203
      %p210 = scmp.eq.s32.totalorder %s42, 7
      %p211 = por %p209, %p210
      %p212 = scmp.ne.s32.totalorder %s204, %s207
      %p213 = scmp.eq.s32.totalorder %s42, 0
      %p214 = por %p212, %p213
      %p215 = scmp.ne.s32.totalorder %s204, %s207
      %p216 = scmp.eq.s32.totalorder %s47, 7
      %p217 = por %p215, %p216
      %p218 = scmp.ne.s32.totalorder %s207, %s208
      %p219 = scmp.eq.s32.totalorder %s47, 0
      %p220 = por %p218, %p219
      %p221 = scmp.ne.s32.totalorder %s207, %s208
      %p222 = scmp.eq.s32.totalorder %s48, 7
      %p223 = por %p221, %p222
      %p225 = scmp.ne.s32.totalorder %s208, %s224
      %p226 = scmp.eq.s32.totalorder %s48, 0
      %p227 = por %p225, %p226
      %s228 = ssub.s32 %s49, %s61
      %s229 = ssub.s32 %s50, %s57
      %s230 = sor.u32 %s228, %s229
      %p231 = scmp.eq.s32.totalorder %s230, 0
      %s233 = sadd.s32 %s232, 1
      %s234 = scalar_select %p231, %s232, %s233
      %p237 = pneg %p231
      %p238 = scmp.eq.s32.totalorder %s42, 7
      %p239 = por %p237, %p238
      %p240 = scmp.ne.s32.totalorder %s232, %s235
      %p241 = scmp.eq.s32.totalorder %s42, 0
      %p242 = por %p240, %p241
      %p243 = scmp.ne.s32.totalorder %s232, %s235
      %p244 = scmp.eq.s32.totalorder %s47, 7
      %p245 = por %p243, %p244
      %p246 = scmp.ne.s32.totalorder %s235, %s236
      %p247 = scmp.eq.s32.totalorder %s47, 0
      %p248 = por %p246, %p247
      %p249 = scmp.ne.s32.totalorder %s235, %s236
      %p250 = scmp.eq.s32.totalorder %s48, 7
      %p251 = por %p249, %p250
      %p253 = scmp.ne.s32.totalorder %s236, %s252
      %p254 = scmp.eq.s32.totalorder %s48, 0
      %p255 = por %p253, %p254
      %p256 = scmp.le.s32.totalorder 1, %s42
      %p257 = scmp.lt.s32.totalorder %s42, 9
      %p258 = pnand %p256, %p257
      %p259 = pneg %p258
      // Predicated region
      $region9: #{tpu_custom_call.1} parent=5 // pred_check
        _
      $region10: #{tpu_custom_call.1} parent=5 // pred_check_branch
        %261 = sbr.rel (%p258) target = $region12
      $region11: #{tpu_custom_call.1} parent=5 // pred_region
        %s262 = ssub.s32 %s42, 1
        // Predicated region
        $region13: #{tpu_custom_call.1} parent=11 // pred_check
          %p263 = pneg %p129
        $region14: #{tpu_custom_call.1} parent=11 // pred_check_branch
          %265 = sbr.rel (%p263) target = $region16
        $region15: #{tpu_custom_call.1} parent=11 // pred_region
          %267 = vsyncadd [#allocation11], 0
          %s268 = sshll.u32 %s4, 4
          %s269 = int_to_ptr.hbm [resolvable:$true] %s268
          %s270 = sshll.u32 [#allocation12], 4
          %s271 = int_to_ptr.vmem [resolvable:$true] %s270
          %276 = dma.hbm_to_vmem [thread:$0]  %s269, 2048, %s271, [#allocation11], 128, 128, 8
        $region16: #{tpu_custom_call.1} parent=11 // pred_fallthru
          _
        // Predicated region
        $region17: #{tpu_custom_call.1} parent=11 // pred_check
          %p277 = pneg %p150
        $region18: #{tpu_custom_call.1} parent=11 // pred_check_branch
          %279 = sbr.rel (%p277) target = $region20
        $region19: #{tpu_custom_call.1} parent=11 // pred_region
          _
        $region20: #{tpu_custom_call.1} parent=11 // pred_fallthru
          _
        // Predicated region
        $region21: #{tpu_custom_call.1} parent=11 // pred_check
          %p280 = pneg %p171
        $region22: #{tpu_custom_call.1} parent=11 // pred_check_branch
          %282 = sbr.rel (%p280) target = $region24
        $region23: #{tpu_custom_call.1} parent=11 // pred_region
          %284 = vsyncadd [#allocation14], 0
          %s285 = sshll.u32 %s6, 4
          %s286 = int_to_ptr.hbm [resolvable:$true] %s285
          %s287 = sshll.u32 [#allocation13], 4
          %s288 = int_to_ptr.vmem [resolvable:$true] %s287
          %293 = dma.hbm_to_vmem [thread:$0]  %s286, 2048, %s288, [#allocation14], 128, 128, 8
        $region24: #{tpu_custom_call.1} parent=11 // pred_fallthru
          _
        // Predicated region
        $region25: #{tpu_custom_call.1} parent=11 // pred_check
          %p294 = pneg %p192
        $region26: #{tpu_custom_call.1} parent=11 // pred_check_branch
          %296 = sbr.rel (%p294) target = $region28
        $region27: #{tpu_custom_call.1} parent=11 // pred_region
          _
        $region28: #{tpu_custom_call.1} parent=11 // pred_fallthru
          _
      $region12: #{tpu_custom_call.1} parent=5 // pred_fallthru
        _
      %p297 = scmp.lt.s32.totalorder %s42, 8
      // Predicated region
      $region29: #{tpu_custom_call.1} parent=5 // pred_check
        %p298 = pneg %p297
      $region30: #{tpu_custom_call.1} parent=5 // pred_check_branch
        %300 = sbr.rel (%p298) target = $region32
      $region31: #{tpu_custom_call.1} parent=5 // pred_region
        // Predicated region
        $region33: #{tpu_custom_call.1} parent=31 // pred_check
          %p301 = pneg %p76
        $region34: #{tpu_custom_call.1} parent=31 // pred_check_branch
          %303 = sbr.rel (%p301) target = $region36
        $region35: #{tpu_custom_call.1} parent=31 // pred_region
          %s304 = sand.u32 %s66, 1
          %s305 = scalar_lea.sflag [#allocation8], %s304
          %s306 = sand.u32 %s66, 1
          %s307 = smul.addr %s306, 8
          %s308 = scalar_lea.vmem [#allocation7], %s307
          %310 = vsyncadd %s305, 0
          %s311 = smul.addr %s49, 4
          %s312 = sadd.s32 %s50, %s311
          %s313 = smul.addr %s312, 8
          %s314 = scalar_lea.hbm %s2, %s313
          %s316 = sshll.u32 %s314, 4
          %s317 = int_to_ptr.hbm [resolvable:$true] %s316
          %s318 = sshll.u32 %s308, 4
          %s319 = int_to_ptr.vmem [resolvable:$true] %s318
          %321 = dma.hbm_to_vmem [thread:$0]  %s317, 128, %s319, %s305
        $region36: #{tpu_custom_call.1} parent=31 // pred_fallthru
          _
        // Predicated region
        $region37: #{tpu_custom_call.1} parent=31 // pred_check
          %p322 = pneg %p102
        $region38: #{tpu_custom_call.1} parent=31 // pred_check_branch
          %324 = sbr.rel (%p322) target = $region40
        $region39: #{tpu_custom_call.1} parent=31 // pred_region
          %s325 = sand.u32 %s42, 1
          %s326 = scalar_lea.sflag [#allocation11], %s325
          %s327 = sand.u32 %s92, 1
          %s328 = smul.addr %s327, 48
          %s329 = scalar_lea.vmem [#allocation10], %s328
          %331 = vsyncadd %s326, 0
          %s332 = smul.addr %s49, 6
          %s333 = smul.addr %s332, 8
          %s334 = scalar_lea.hbm %s3, %s333
          %s335 = sshll.u32 %s334, 4
          %s336 = int_to_ptr.hbm [resolvable:$true] %s335
          %s337 = sshll.u32 %s329, 4
          %s338 = int_to_ptr.vmem [resolvable:$true] %s337
          %343 = dma.hbm_to_vmem [thread:$0]  %s336, 768, %s338, %s326, 128, 128, 8
        $region40: #{tpu_custom_call.1} parent=31 // pred_fallthru
          _
      $region32: #{tpu_custom_call.1} parent=5 // pred_fallthru
        _
      %p344 = scmp.le.s32.totalorder 1, %s42
      %p345 = scmp.lt.s32.totalorder %s42, 9
      %p346 = pnand %p344, %p345
      %p347 = pneg %p346
      // Predicated region
      $region41: #{tpu_custom_call.1} parent=5 // pred_check
        _
      $region42: #{tpu_custom_call.1} parent=5 // pred_check_branch
        %349 = sbr.rel (%p346) target = $region44
      $region43: #{tpu_custom_call.1} parent=5 // pred_region
        %s350 = ssub.s32 %s42, 1
        %s351 = sand.u32 %s69, 1
        %s352 = scalar_lea.sflag [#allocation8], %s351
        %s353 = sand.u32 %s69, 1
        %s354 = smul.addr %s353, 8
        %s355 = scalar_lea.vmem [#allocation7], %s354
        // Predicated region
        $region45: #{tpu_custom_call.1} parent=43 // pred_check
          %p356 = pneg %p82
        $region46: #{tpu_custom_call.1} parent=43 // pred_check_branch
          %358 = sbr.rel (%p356) target = $region48
        $region47: #{tpu_custom_call.1} parent=43 // pred_region
          %360 = dma.done %s352, 128
        $region48: #{tpu_custom_call.1} parent=43 // pred_fallthru
          _
        %s361 = sand.u32 %s47, 1
        %s362 = scalar_lea.sflag [#allocation11], %s361
        %s363 = sand.u32 %s95, 1
        %s364 = smul.addr %s363, 48
        %s365 = scalar_lea.vmem [#allocation10], %s364
        // Predicated region
        $region49: #{tpu_custom_call.1} parent=43 // pred_check
          %p366 = pneg %p108
        $region50: #{tpu_custom_call.1} parent=43 // pred_check_branch
          %368 = sbr.rel (%p366) target = $region52
        $region51: #{tpu_custom_call.1} parent=43 // pred_region
          %370 = dma.done %s362, 768
        $region52: #{tpu_custom_call.1} parent=43 // pred_fallthru
          _
        // Predicated region
        $region53: #{tpu_custom_call.1} parent=43 // pred_check
          %p371 = pneg %p129
        $region54: #{tpu_custom_call.1} parent=43 // pred_check_branch
          %373 = sbr.rel (%p371) target = $region56
        $region55: #{tpu_custom_call.1} parent=43 // pred_region
          %375 = dma.done [#allocation11], 2048
        $region56: #{tpu_custom_call.1} parent=43 // pred_fallthru
          _
        // Predicated region
        $region57: #{tpu_custom_call.1} parent=43 // pred_check
          %p376 = pneg %p171
        $region58: #{tpu_custom_call.1} parent=43 // pred_check_branch
          %378 = sbr.rel (%p376) target = $region60
        $region59: #{tpu_custom_call.1} parent=43 // pred_region
          %380 = dma.done [#allocation14], 2048
        $region60: #{tpu_custom_call.1} parent=43 // pred_fallthru
          _
        %s381 = sand.u32 %s69, 1
        %s382 = scalar_lea.sflag [#allocation8], %s381
        %s383 = sand.u32 %s69, 1
        %s384 = smul.addr %s383, 8
        %s385 = scalar_lea.vmem [#allocation7], %s384
        %p386 = pneg %p82
        %p387 = pneg %p79
        %s388 = sand.u32 %s47, 1
        %s389 = scalar_lea.sflag [#allocation11], %s388
        %s390 = sand.u32 %s95, 1
        %s391 = smul.addr %s390, 48
        %s392 = scalar_lea.vmem [#allocation10], %s391
        %p393 = pneg %p108
        %p394 = pneg %p105
        %p395 = pneg %p129
        %p396 = pneg %p126
        %p397 = pneg %p150
        %p398 = pneg %p147
        %p399 = pneg %p171
        %p400 = pneg %p168
        %p401 = pneg %p192
        %p402 = pneg %p189
        %p403 = pneg %p220
        %p404 = pneg %p217
        %s405 = sand.u32 %s207, 1
        %s406 = scalar_lea.sflag [#allocation9], %s405
        %s407 = sand.u32 %s207, 1
        %s408 = smul.addr %s407, 48
        %s409 = scalar_lea.vmem [#allocation15], %s408
        %p410 = pneg %p248
        %p411 = pneg %p245
        %s412 = sand.u32 %s235, 1
        %s413 = scalar_lea.sflag [#allocation17], %s412
        %s414 = sand.u32 %s235, 1
        %s415 = smul.addr %s414, 48
        %s416 = scalar_lea.vmem [#allocation16], %s415
        %p417 = scmp.eq.s32.totalorder %s52, 0
        // Predicated region
        $region61: #{tpu_custom_call.1} parent=43 // pred_check
          %p418 = pneg %p417
        $region62: #{tpu_custom_call.1} parent=43 // pred_check_branch
          %420 = sbr.rel (%p418) target = $region64
        $region63: #{tpu_custom_call.1} parent=43 // pred_region
          %s421 = smul.u32 %s51, 128
          %s422 = sld [smem:[#allocation6 + %s421]]
          %s423 = scalar_lea.vmem %s365, %s422 [#allocation10]
          %v424 = vld [vmem:[%s423] sm:$0x1]
          %425 = vst [vmem:[#allocation3] sm:$0x1] %v424
          %s426 = sadd.s32 %s421, 1
          %s427 = sld [smem:[#allocation6 + %s426]]
          %s428 = sadd.s32 %s427, 8
          %s429 = scalar_lea.vmem %s365, %s428 [#allocation10]
          %v430 = vld [vmem:[%s429] sm:$0x1]
          %431 = vst [vmem:[#allocation3 + $0x1] sm:$0x1] %v430
          %s432 = sadd.s32 %s421, 2
          %s433 = sld [smem:[#allocation6 + %s432]]
          %s434 = sadd.s32 %s433, 16
          %s435 = scalar_lea.vmem %s365, %s434 [#allocation10]
          %v436 = vld [vmem:[%s435] sm:$0x1]
          %437 = vst [vmem:[#allocation3 + $0x2] sm:$0x1] %v436
          %s438 = sadd.s32 %s421, 3
          %s439 = sld [smem:[#allocation6 + %s438]]
          %s440 = sadd.s32 %s439, 24
          %s441 = scalar_lea.vmem %s365, %s440 [#allocation10]
          %v442 = vld [vmem:[%s441] sm:$0x1]
          %443 = vst [vmem:[#allocation3 + $0x3] sm:$0x1] %v442
          %s444 = sadd.s32 %s421, 4
          %s445 = sld [smem:[#allocation6 + %s444]]
          %s446 = sadd.s32 %s445, 32
          %s447 = scalar_lea.vmem %s365, %s446 [#allocation10]
          %v448 = vld [vmem:[%s447] sm:$0x1]
          %449 = vst [vmem:[#allocation3 + $0x4] sm:$0x1] %v448
          %s450 = sadd.s32 %s421, 5
          %s451 = sld [smem:[#allocation6 + %s450]]
          %s452 = sadd.s32 %s451, 40
          %s453 = scalar_lea.vmem %s365, %s452 [#allocation10]
          %v454 = vld [vmem:[%s453] sm:$0x1]
          %455 = vst [vmem:[#allocation3 + $0x5] sm:$0x1] %v454
          %v456 = vld [vmem:[#allocation3] sm:$0x3f]
          %v457 = vld [vmem:[#allocation13] sm:$0xff]
          %v458 = vld [vmem:[#allocation13 + $0x8] sm:$0xff]
          %v459 = vld [vmem:[#allocation13 + $0x10] sm:$0xff]
          %v460 = vld [vmem:[#allocation13 + $0x18] sm:$0xff]
          %v461 = vld [vmem:[#allocation13 + $0x20] sm:$0xff]
          %v462 = vld [vmem:[#allocation13 + $0x28] sm:$0xff]
          %v463 = vld [vmem:[#allocation13 + $0x30] sm:$0xff]
          %v464 = vld [vmem:[#allocation13 + $0x38] sm:$0xff]
          %v465 = vld [vmem:[#allocation13 + $0x40] sm:$0xff]
          %v466 = vld [vmem:[#allocation13 + $0x48] sm:$0xff]
          %v467 = vld [vmem:[#allocation13 + $0x50] sm:$0xff]
          %v468 = vld [vmem:[#allocation13 + $0x58] sm:$0xff]
          %v469 = vld [vmem:[#allocation13 + $0x60] sm:$0xff]
          %v470 = vld [vmem:[#allocation13 + $0x68] sm:$0xff]
          %v471 = vld [vmem:[#allocation13 + $0x70] sm:$0xff]
          %v472 = vld [vmem:[#allocation13 + $0x78] sm:$0xff]
          %v473 = vld [vmem:[%s7] sm:$0x1]
          %v475 = vperm.slane %v473, 0
          %477 = vmatpush.msra.mxu0 %v472
          %478 = vmatpush.msra.mxu0 %v471
          %479 = vmatpush.msra.mxu0 %v470
          %480 = vmatpush.msra.mxu0 %v469
          %481 = vmatpush.msra.mxu0 %v468
          %482 = vmatpush.msra.mxu0 %v467
          %483 = vmatpush.msra.mxu0 %v466
          %484 = vmatpush.msra.mxu0 %v465
          %485 = vmatpush.msra.mxu0 %v464
          %486 = vmatpush.msra.mxu0 %v463
          %487 = vmatpush.msra.mxu0 %v462
          %488 = vmatpush.msra.mxu0 %v461
          %489 = vmatpush.msra.mxu0 %v460
          %490 = vmatpush.msra.mxu0 %v459
          %491 = vmatpush.msra.mxu0 %v458
          %492 = vmatpush.msra.mxu0 %v457
          %493 = vmatmul.f32.gmra.mxu0 %v456
          %v494 = vpop.f32.mrf.mxu0
          %v495 = vadd.f32 %v475, %v494
          %496 = vdwg.mxu0
          %497 = vst [vmem:[#allocation2] sm:$0x3f] %v495
        $region64: #{tpu_custom_call.1} parent=43 // pred_fallthru
          _
        %s498 = sshra.s32 %s52, 7
        %s499 = sand.u32 %s52, 127
        %s500 = sadd.s32 %s498, %s51
        %s501 = smul.u32 %s500, 128
        %s502 = sshra.s32 %s52, 7
        %s503 = sand.u32 %s52, 127
        %s504 = sadd.s32 %s501, %s503
        %s505 = sld [smem:[#allocation5 + %s504]]
        %s506 = scalar_lea.vmem %s355, %s505 [#allocation7]
        %v507 = vld [vmem:[%s506] sm:$0x1]
        %v508 = vld [vmem:[#allocation12] sm:$0xff]
        %v509 = vld [vmem:[#allocation12 + $0x8] sm:$0xff]
        %v510 = vld [vmem:[#allocation12 + $0x10] sm:$0xff]
        %v511 = vld [vmem:[#allocation12 + $0x18] sm:$0xff]
        %v512 = vld [vmem:[#allocation12 + $0x20] sm:$0xff]
        %v513 = vld [vmem:[#allocation12 + $0x28] sm:$0xff]
        %v514 = vld [vmem:[#allocation12 + $0x30] sm:$0xff]
        %v515 = vld [vmem:[#allocation12 + $0x38] sm:$0xff]
        %v516 = vld [vmem:[#allocation12 + $0x40] sm:$0xff]
        %v517 = vld [vmem:[#allocation12 + $0x48] sm:$0xff]
        %v518 = vld [vmem:[#allocation12 + $0x50] sm:$0xff]
        %v519 = vld [vmem:[#allocation12 + $0x58] sm:$0xff]
        %v520 = vld [vmem:[#allocation12 + $0x60] sm:$0xff]
        %v521 = vld [vmem:[#allocation12 + $0x68] sm:$0xff]
        %v522 = vld [vmem:[#allocation12 + $0x70] sm:$0xff]
        %v523 = vld [vmem:[#allocation12 + $0x78] sm:$0xff]
        %v524 = vld [vmem:[%s5] sm:$0x1]
        %525 = vmatpush.msra.mxu0 %v523
        %526 = vmatpush.msra.mxu0 %v522
        %527 = vmatpush.msra.mxu0 %v521
        %528 = vmatpush.msra.mxu0 %v520
        %529 = vmatpush.msra.mxu0 %v519
        %530 = vmatpush.msra.mxu0 %v518
        %531 = vmatpush.msra.mxu0 %v517
        %532 = vmatpush.msra.mxu0 %v516
        %533 = vmatpush.msra.mxu0 %v515
        %534 = vmatpush.msra.mxu0 %v514
        %535 = vmatpush.msra.mxu0 %v513
        %536 = vmatpush.msra.mxu0 %v512
        %537 = vmatpush.msra.mxu0 %v511
        %538 = vmatpush.msra.mxu0 %v510
        %539 = vmatpush.msra.mxu0 %v509
        %540 = vmatpush.msra.mxu0 %v508
        %541 = vmatmul.f32.gmra.mxu0 %v507
        %v542 = vpop.f32.mrf.mxu0
        %v543 = vadd.f32 %v524, %v542
        %544 = vdwg.mxu0
        %v545 = vld [vmem:[%s355] sm:$0xff]
        %v546 = vld [vmem:[%s365] sm:$0xff]
        %v547 = vld [vmem:[%s365 + $0x8] sm:$0xff]
        %v548 = vld [vmem:[%s365 + $0x10] sm:$0xff]
        %v549 = vld [vmem:[%s365 + $0x18] sm:$0xff]
        %v550 = vld [vmem:[%s365 + $0x20] sm:$0xff]
        %v551 = vld [vmem:[%s365 + $0x28] sm:$0xff]
        %v552 = vld [vmem:[#allocation2] sm:$0x3f]
        %v554 = vrot.slane %v552, 1
        %v555 = vrot.slane %v552, 2
        %v556 = vrot.slane %v552, 3
        %v557 = vrot.slane %v552, 4
        %v558 = vrot.slane %v552, 5
        %v559 = vperm.slane %v552, 0
        %v560 = vperm.slane %v554, 0
        %v561 = vperm.slane %v555, 0
        %v562 = vperm.slane %v556, 0
        %v563 = vperm.slane %v557, 0
        %v564 = vperm.slane %v558, 0
        %v571 = vmul.f32 %v545, %v559
        %v572 = vmul.f32 %v545, %v560
        %v573 = vmul.f32 %v545, %v561
        %v574 = vmul.f32 %v545, %v562
        %v575 = vmul.f32 %v545, %v563
        %v576 = vmul.f32 %v545, %v564
        %577 = vst [vmem:[%s409] sm:$0xff] %v571
        %578 = vst [vmem:[%s409 + $0x8] sm:$0xff] %v572
        %579 = vst [vmem:[%s409 + $0x10] sm:$0xff] %v573
        %580 = vst [vmem:[%s409 + $0x18] sm:$0xff] %v574
        %581 = vst [vmem:[%s409 + $0x20] sm:$0xff] %v575
        %582 = vst [vmem:[%s409 + $0x28] sm:$0xff] %v576
        %v583 = vperm.slane %v543, 0
        %v584 = vmul.f32 %v546, %v583
        %v585 = vmul.f32 %v547, %v583
        %v586 = vmul.f32 %v548, %v583
        %v587 = vmul.f32 %v549, %v583
        %v588 = vmul.f32 %v550, %v583
        %v589 = vmul.f32 %v551, %v583
        %590 = vst [vmem:[%s416] sm:$0xff] %v584
        %591 = vst [vmem:[%s416 + $0x8] sm:$0xff] %v585
        %592 = vst [vmem:[%s416 + $0x10] sm:$0xff] %v586
        %593 = vst [vmem:[%s416 + $0x18] sm:$0xff] %v587
        %594 = vst [vmem:[%s416 + $0x20] sm:$0xff] %v588
        %595 = vst [vmem:[%s416 + $0x28] sm:$0xff] %v589
        %s596 = sand.u32 %s207, 1
        %s597 = scalar_lea.sflag [#allocation9], %s596
        %s598 = sand.u32 %s207, 1
        %s599 = smul.addr %s598, 48
        %s600 = scalar_lea.vmem [#allocation15], %s599
        %s601 = sand.u32 %s235, 1
        %s602 = scalar_lea.sflag [#allocation17], %s601
        %s603 = sand.u32 %s235, 1
        %s604 = smul.addr %s603, 48
        %s605 = scalar_lea.vmem [#allocation16], %s604
        // Predicated region
        $region65: #{tpu_custom_call.1} parent=43 // pred_check
          %p606 = pneg %p217
        $region66: #{tpu_custom_call.1} parent=43 // pred_check_branch
          %608 = sbr.rel (%p606) target = $region68
        $region67: #{tpu_custom_call.1} parent=43 // pred_region
          %610 = vsyncadd %s597, 0
          %s611 = smul.addr %s52, 6
          %s612 = smul.addr %s51, 24
          %s613 = sadd.s32 %s611, %s612
          %s614 = smul.addr %s613, 8
          %s615 = scalar_lea.hbm %s8, %s614
          %s616 = sshll.u32 %s600, 4
          %s617 = int_to_ptr.vmem [resolvable:$true] %s616
          %s618 = sshll.u32 %s615, 4
          %s619 = int_to_ptr.hbm [resolvable:$true] %s618
          %624 = dma.vmem_to_hbm [thread:$0]  %s617, 768, %s619, %s597, 128, 128, 8
        $region68: #{tpu_custom_call.1} parent=43 // pred_fallthru
          _
        // Predicated region
        $region69: #{tpu_custom_call.1} parent=43 // pred_check
          %p625 = pneg %p245
        $region70: #{tpu_custom_call.1} parent=43 // pred_check_branch
          %627 = sbr.rel (%p625) target = $region72
        $region71: #{tpu_custom_call.1} parent=43 // pred_region
          %629 = vsyncadd %s602, 0
          %s630 = smul.addr %s52, 6
          %s631 = smul.addr %s51, 24
          %s632 = sadd.s32 %s630, %s631
          %s633 = smul.addr %s632, 8
          %s634 = scalar_lea.hbm %s9, %s633
          %s635 = sshll.u32 %s605, 4
          %s636 = int_to_ptr.vmem [resolvable:$true] %s635
          %s637 = sshll.u32 %s634, 4
          %s638 = int_to_ptr.hbm [resolvable:$true] %s637
          %643 = dma.vmem_to_hbm [thread:$0]  %s636, 768, %s638, %s602, 128, 128, 8
        $region72: #{tpu_custom_call.1} parent=43 // pred_fallthru
          _
      $region44: #{tpu_custom_call.1} parent=5 // pred_fallthru
        _
      %p644 = scmp.le.s32.totalorder 2, %s42
      // Predicated region
      $region73: #{tpu_custom_call.1} parent=5 // pred_check
        %p645 = pneg %p644
      $region74: #{tpu_custom_call.1} parent=5 // pred_check_branch
        %647 = sbr.rel (%p645) target = $region76
      $region75: #{tpu_custom_call.1} parent=5 // pred_region
        %s648 = ssub.s32 %s42, 2
        // Predicated region
        $region77: #{tpu_custom_call.1} parent=75 // pred_check
          %p649 = pneg %p223
        $region78: #{tpu_custom_call.1} parent=75 // pred_check_branch
          %651 = sbr.rel (%p649) target = $region80
        $region79: #{tpu_custom_call.1} parent=75 // pred_region
          %s652 = sand.u32 %s208, 1
          %s653 = scalar_lea.sflag [#allocation9], %s652
          %s654 = sand.u32 %s208, 1
          %s655 = smul.addr %s654, 48
          %s656 = scalar_lea.vmem [#allocation15], %s655
          %658 = dma.done %s653, 768
        $region80: #{tpu_custom_call.1} parent=75 // pred_fallthru
          _
        // Predicated region
        $region81: #{tpu_custom_call.1} parent=75 // pred_check
          %p659 = pneg %p251
        $region82: #{tpu_custom_call.1} parent=75 // pred_check_branch
          %661 = sbr.rel (%p659) target = $region84
        $region83: #{tpu_custom_call.1} parent=75 // pred_region
          %s662 = sand.u32 %s236, 1
          %s663 = scalar_lea.sflag [#allocation17], %s662
          %s664 = sand.u32 %s236, 1
          %s665 = smul.addr %s664, 48
          %s666 = scalar_lea.vmem [#allocation16], %s665
          %668 = dma.done %s663, 768
        $region84: #{tpu_custom_call.1} parent=75 // pred_fallthru
          _
      $region76: #{tpu_custom_call.1} parent=5 // pred_fallthru
        _
    $region6: #{tpu_custom_call.1} parent=1 // loop_footer
      %s46 = sadd.s32 1, %s42
    $region7: #{tpu_custom_call.1} parent=1 // loop_footer_branch
      %41 = sbr.rel target = $region3
    $region8: #{tpu_custom_call.1} parent=1 // loop_exit
      _
    %669 = vsyncpa [#allocation8], 1
    %s670 = scalar_lea.sflag [#allocation8], 1
    %671 = vsyncpa %s670, 1
    %672 = vsyncpa [#allocation11], 1
    %s673 = scalar_lea.sflag [#allocation11], 1
    %674 = vsyncpa %s673, 1
    %675 = vsyncpa [#allocation14], 1
    %676 = vsyncpa [#allocation9], 1
    %s677 = scalar_lea.sflag [#allocation9], 1
    %678 = vsyncpa %s677, 1
    %679 = vsyncpa [#allocation17], 1
    %s680 = scalar_lea.sflag [#allocation17], 1
    %681 = vsyncpa %s680, 1

</llo_original>
